<compile_context>
chip_gen: v5e
topology: v5e:2x2
jax: 0.10.0
libtpu: 0.0.40
codegen_flags: <defaults>
</compile_context>

<pallas_src>
import functools

import jax
import jax.numpy as jnp
from jax.experimental import pallas as pl
from jax.experimental.pallas import tpu as pltpu

_LANES = 128
_SUBLANES = 8


def _lstm_gen_kernel(x_ref, wih_t_ref, b_ref, wlin_t_ref, blin_ref, o_ref):
    """One LSTM cell step (zero state, pruned f-gate) + linear projection."""
    H = wlin_t_ref.shape[0]  # hidden_dim

    # gates = x @ W_ih^T[:, i|g|o] + (b_ih + b_hh)[i|g|o]   -> (TB, 3H) f32
    gates = jnp.dot(x_ref[...], wih_t_ref[...],
                    preferred_element_type=jnp.float32) + b_ref[...]

    i_g = jax.nn.sigmoid(gates[:, 0 * H:1 * H])
    g_g = jnp.tanh(gates[:, 1 * H:2 * H])
    o_g = jax.nn.sigmoid(gates[:, 2 * H:3 * H])

    h = o_g * jnp.tanh(i_g * g_g)            # c = i*tanh(g); h = o*tanh(c)

    # Final linear projection into a lane-dense (TB, ts_pad) slab.
    y = jnp.dot(h, wlin_t_ref[...], preferred_element_type=jnp.float32)
    o_ref[...] = (y + blin_ref[...]).astype(o_ref.dtype)


def prepare_lstm_generator_params(w_ih, w_hh, b_ih, b_hh, w_lin, b_lin):
    """One-time parameter prep (hoisted out of the per-call forward path).

    Returns (wih_t_igo, bias_igo, wlin_t_pad, blin_pad, ts_dim).
    """
    del w_hh  # recurrent weights multiply h0 == 0 for seq_len == 1
    ts_dim, hidden_dim = w_lin.shape
    H = hidden_dim

    # Prune the unused forget-gate block (gate order i, f, g, o -> keep i, g, o).
    w_ih_igo = jnp.concatenate(
        [w_ih[0 * H:1 * H], w_ih[2 * H:3 * H], w_ih[3 * H:4 * H]], axis=0)
    wih_t_igo = jnp.transpose(w_ih_igo).astype(jnp.float32)    # (latent, 3H)
    b_sum = (b_ih + b_hh).astype(jnp.float32)
    bias_igo = jnp.concatenate(
        [b_sum[0 * H:1 * H], b_sum[2 * H:3 * H], b_sum[3 * H:4 * H]],
        axis=0).reshape(1, 3 * H)                              # (1, 3H)

    # Lane-dense output: pad ts_dim up to a multiple of 128 lanes.
    ts_pad = max(_LANES, pl.cdiv(ts_dim, _LANES) * _LANES)
    wlin_t_pad = jnp.zeros((H, ts_pad), jnp.float32).at[:, :ts_dim].set(
        jnp.transpose(w_lin).astype(jnp.float32))              # (H, ts_pad)
    blin_pad = jnp.zeros((1, ts_pad), jnp.float32).at[:, :ts_dim].set(
        b_lin.astype(jnp.float32).reshape(1, ts_dim))          # (1, ts_pad)

    return wih_t_igo, bias_igo, wlin_t_pad, blin_pad, ts_dim


@functools.partial(jax.jit, static_argnames=("ts_dim",))
def _forward_prepared(x, wih_t_igo, bias_igo, wlin_t_pad, blin_pad, *, ts_dim):
    """Jitted forward with pre-prepared params.  x: (B, latent) f32."""
    B, latent_dim = x.shape
    H3 = wih_t_igo.shape[1]
    H = wlin_t_pad.shape[0]
    ts_pad = wlin_t_pad.shape[1]

    # Batch tile: multiple of 8 sublanes, capped at 128; pad B up to a
    # multiple of the tile.
    TB = min(_LANES, pl.cdiv(B, _SUBLANES) * _SUBLANES)
    B_pad = pl.cdiv(B, TB) * TB
    if B_pad != B:
        x = jnp.zeros((B_pad, latent_dim), x.dtype).at[:B].set(x)
    grid = (B_pad // TB,)

    out_pad = pl.pallas_call(
        _lstm_gen_kernel,
        out_shape=jax.ShapeDtypeStruct((B_pad, ts_pad), jnp.float32),
        grid_spec=pltpu.PrefetchScalarGridSpec(
            num_scalar_prefetch=0,
            grid=grid,
            in_specs=[
                pl.BlockSpec((TB, latent_dim), lambda b: (b, 0)),   # x tile
                pl.BlockSpec((latent_dim, H3), lambda b: (0, 0)),   # W_ih^T igo
                pl.BlockSpec((1, H3), lambda b: (0, 0)),            # bias igo
                pl.BlockSpec((H, ts_pad), lambda b: (0, 0)),        # W_lin^T pad
                pl.BlockSpec((1, ts_pad), lambda b: (0, 0)),        # b_lin pad
            ],
            out_specs=pl.BlockSpec((TB, ts_pad), lambda b: (b, 0)),
        ),
        compiler_params=pltpu.CompilerParams(
            dimension_semantics=("parallel",)),
    )(x, wih_t_igo, bias_igo, wlin_t_pad, blin_pad)

    return out_pad[:B, :ts_dim]


def lstm_generator_forward(x, w_ih, w_hh, b_ih, b_hh, w_lin, b_lin):
    """Convenience wrapper: prep params then run the kernel.

    In a real loop, call prepare_lstm_generator_params() once and reuse the
    result with _forward_prepared() on every step.
    """
    wih_t_igo, bias_igo, wlin_t_pad, blin_pad, ts_dim = (
        prepare_lstm_generator_params(w_ih, w_hh, b_ih, b_hh, w_lin, b_lin))
    return _forward_prepared(x, wih_t_igo, bias_igo, wlin_t_pad, blin_pad,
                             ts_dim=ts_dim)


def _reference_forward(x, w_ih, w_hh, b_ih, b_hh, w_lin, b_lin):
    """Pure-JAX reference mirroring torch.nn.LSTM (1 step, zero state) + Linear."""
    H = w_hh.shape[1]
    gates = x @ w_ih.T + b_ih + b_hh  # h0 == 0 -> h0 @ w_hh.T == 0
    i = jax.nn.sigmoid(gates[:, 0 * H:1 * H])
    g = jnp.tanh(gates[:, 2 * H:3 * H])
    o = jax.nn.sigmoid(gates[:, 3 * H:4 * H])
    c = i * g
    h = o * jnp.tanh(c)
    return h @ w_lin.T + b_lin


if __name__ == "__main__":
    # Small shapes consistent with the module's forward.
    batch = 4
    latent_dim = 16
    hidden_dim = 128
    ts_dim = 8

    key = jax.random.PRNGKey(0)
    ks = jax.random.split(key, 7)
    scale = 1.0 / jnp.sqrt(hidden_dim)

    x = jax.random.normal(ks[0], (batch, latent_dim), dtype=jnp.float32)
    w_ih = jax.random.uniform(ks[1], (4 * hidden_dim, latent_dim),
                              minval=-scale, maxval=scale, dtype=jnp.float32)
    w_hh = jax.random.uniform(ks[2], (4 * hidden_dim, hidden_dim),
                              minval=-scale, maxval=scale, dtype=jnp.float32)
    b_ih = jax.random.uniform(ks[3], (4 * hidden_dim,),
                              minval=-scale, maxval=scale, dtype=jnp.float32)
    b_hh = jax.random.uniform(ks[4], (4 * hidden_dim,),
                              minval=-scale, maxval=scale, dtype=jnp.float32)
    w_lin = jax.random.uniform(ks[5], (ts_dim, hidden_dim),
                               minval=-scale, maxval=scale, dtype=jnp.float32)
    b_lin = jax.random.uniform(ks[6], (ts_dim,),
                               minval=-scale, maxval=scale, dtype=jnp.float32)

    # Hoisted one-time parameter prep, then the (jitted) kernel forward.
    prepared = prepare_lstm_generator_params(w_ih, w_hh, b_ih, b_hh,
                                             w_lin, b_lin)
    prepared = jax.block_until_ready(prepared)
    out = _forward_prepared(x, *prepared[:4], ts_dim=prepared[4])
    out = jax.block_until_ready(out)

    ref = _reference_forward(x, w_ih, w_hh, b_ih, b_hh, w_lin, b_lin)
    assert out.shape == (batch, ts_dim)
    assert jnp.allclose(out, ref, atol=1e-5, rtol=1e-5), "mismatch vs reference"

    print("KERNEL_OK")
</pallas_src>

<mosaic_0001>
module attributes {stable_mosaic.version = 11 : i64} {
  func.func @_lstm_gen_kernel(%arg0: i32, %arg1: memref<8x16xf32, #tpu.memory_space<vmem>>, %arg2: memref<16x384xf32, #tpu.memory_space<vmem>>, %arg3: memref<1x384xf32, #tpu.memory_space<vmem>>, %arg4: memref<128x128xf32, #tpu.memory_space<vmem>>, %arg5: memref<1x128xf32, #tpu.memory_space<vmem>>, %arg6: memref<8x128xf32, #tpu.memory_space<vmem>>) attributes {dimension_semantics = [#tpu.dimension_semantics<parallel>], iteration_bounds = array<i64: 1>, scalar_prefetch = 0 : i64, scratch_operands = 0 : i64, tpu.core_type = #tpu.core_type<tc>, window_params = [{transform_indices = @transform_0, window_bounds = array<i64: 8, 16>}, {pipeline_mode = #tpu.pipeline_mode<synchronous>, transform_indices = @transform_1, window_bounds = array<i64: 16, 384>}, {pipeline_mode = #tpu.pipeline_mode<synchronous>, transform_indices = @transform_2, window_bounds = array<i64: 1, 384>}, {pipeline_mode = #tpu.pipeline_mode<synchronous>, transform_indices = @transform_3, window_bounds = array<i64: 128, 128>}, {pipeline_mode = #tpu.pipeline_mode<synchronous>, transform_indices = @transform_4, window_bounds = array<i64: 1, 128>}, {transform_indices = @transform_5, window_bounds = array<i64: 8, 128>}]} {
    %c0 = arith.constant 0 : index
    %c0_0 = arith.constant 0 : index
    %0 = vector.load %arg1[%c0, %c0_0] : memref<8x16xf32, #tpu.memory_space<vmem>>, vector<8x16xf32>
    %c0_1 = arith.constant 0 : index
    %c0_2 = arith.constant 0 : index
    %1 = vector.load %arg2[%c0_1, %c0_2] : memref<16x384xf32, #tpu.memory_space<vmem>>, vector<16x384xf32>
    %cst = arith.constant dense<0.000000e+00> : vector<8x384xf32>
    %2 = tpu.matmul %0, %1, %cst {dimension_numbers = #tpu.dot_dimension_numbers<[1], [0], [0], [1], [0, 0, 1, 1], [], []>} : vector<8x16xf32>, vector<16x384xf32>, vector<8x384xf32> -> vector<8x384xf32>
    %c0_3 = arith.constant 0 : index
    %c0_4 = arith.constant 0 : index
    %3 = vector.load %arg3[%c0_3, %c0_4] : memref<1x384xf32, #tpu.memory_space<vmem>>, vector<1x384xf32>
    %4 = vector.broadcast %3 : vector<1x384xf32> to vector<8x384xf32>
    %5 = arith.addf %2, %4 : vector<8x384xf32>
    %6 = vector.extract_strided_slice %5 {offsets = [0, 0], sizes = [8, 128], strides = [1, 1]} : vector<8x384xf32> to vector<8x128xf32>
    %7 = arith.negf %6 : vector<8x128xf32>
    %8 = math.exp %7 : vector<8x128xf32>
    %cst_5 = arith.constant 1.000000e+00 : f32
    %9 = vector.broadcast %cst_5 : f32 to vector<8x128xf32>
    %10 = arith.addf %9, %8 : vector<8x128xf32>
    %11 = arith.divf %9, %10 : vector<8x128xf32>
    %12 = vector.extract_strided_slice %5 {offsets = [0, 128], sizes = [8, 128], strides = [1, 1]} : vector<8x384xf32> to vector<8x128xf32>
    %13 = math.tanh %12 : vector<8x128xf32>
    %14 = vector.extract_strided_slice %5 {offsets = [0, 256], sizes = [8, 128], strides = [1, 1]} : vector<8x384xf32> to vector<8x128xf32>
    %15 = arith.negf %14 : vector<8x128xf32>
    %16 = math.exp %15 : vector<8x128xf32>
    %cst_6 = arith.constant 1.000000e+00 : f32
    %17 = vector.broadcast %cst_6 : f32 to vector<8x128xf32>
    %18 = arith.addf %17, %16 : vector<8x128xf32>
    %19 = arith.divf %17, %18 : vector<8x128xf32>
    %20 = arith.mulf %11, %13 : vector<8x128xf32>
    %21 = math.tanh %20 : vector<8x128xf32>
    %22 = arith.mulf %19, %21 : vector<8x128xf32>
    %c0_7 = arith.constant 0 : index
    %c0_8 = arith.constant 0 : index
    %23 = vector.load %arg4[%c0_7, %c0_8] : memref<128x128xf32, #tpu.memory_space<vmem>>, vector<128x128xf32>
    %cst_9 = arith.constant dense<0.000000e+00> : vector<8x128xf32>
    %24 = tpu.matmul %22, %23, %cst_9 {dimension_numbers = #tpu.dot_dimension_numbers<[1], [0], [0], [1], [0, 0, 1, 1], [], []>} : vector<8x128xf32>, vector<128x128xf32>, vector<8x128xf32> -> vector<8x128xf32>
    %c0_10 = arith.constant 0 : index
    %c0_11 = arith.constant 0 : index
    %25 = vector.load %arg5[%c0_10, %c0_11] : memref<1x128xf32, #tpu.memory_space<vmem>>, vector<1x128xf32>
    %26 = vector.broadcast %25 : vector<1x128xf32> to vector<8x128xf32>
    %27 = arith.addf %24, %26 : vector<8x128xf32>
    %c0_12 = arith.constant 0 : index
    %c0_13 = arith.constant 0 : index
    %28 = vector.load %arg6[%c0_12, %c0_13] : memref<8x128xf32, #tpu.memory_space<vmem>>, vector<8x128xf32>
    tpu.vector_store %arg6[%c0_12, %c0_13], %27 {strides = array<i32>} : memref<8x128xf32, #tpu.memory_space<vmem>>, vector<8x128xf32>,
    return
  }
  func.func @transform_0(%arg0: i32) -> (i32, i32) {
    %c0_i32 = arith.constant 0 : i32
    %c0_i32_0 = arith.constant 0 : i32
    return %arg0, %c0_i32 : i32, i32
  }
  func.func @transform_1(%arg0: i32) -> (i32, i32) {
    %c0_i32 = arith.constant 0 : i32
    %c0_i32_0 = arith.constant 0 : i32
    %c0_i32_1 = arith.constant 0 : i32
    return %c0_i32, %c0_i32_0 : i32, i32
  }
  func.func @transform_2(%arg0: i32) -> (i32, i32) {
    %c0_i32 = arith.constant 0 : i32
    %c0_i32_0 = arith.constant 0 : i32
    %c0_i32_1 = arith.constant 0 : i32
    return %c0_i32, %c0_i32_0 : i32, i32
  }
  func.func @transform_3(%arg0: i32) -> (i32, i32) {
    %c0_i32 = arith.constant 0 : i32
    %c0_i32_0 = arith.constant 0 : i32
    %c0_i32_1 = arith.constant 0 : i32
    return %c0_i32, %c0_i32_0 : i32, i32
  }
  func.func @transform_4(%arg0: i32) -> (i32, i32) {
    %c0_i32 = arith.constant 0 : i32
    %c0_i32_0 = arith.constant 0 : i32
    %c0_i32_1 = arith.constant 0 : i32
    return %c0_i32, %c0_i32_0 : i32, i32
  }
  func.func @transform_5(%arg0: i32) -> (i32, i32) {
    %c0_i32 = arith.constant 0 : i32
    %c0_i32_0 = arith.constant 0 : i32
    return %arg0, %c0_i32 : i32, i32
  }
}

</mosaic_0001>

<llo_original>
// kernel: _forward_prepared.1
$region0: #{_forward_prepared.1}
  #allocation0 [shape = 'u32[]', space=smem, size = 0x4, offset = 0x4, fixed_abs, tag = 'smem constant byte address 0x4 - core index']
  #allocation1 [shape = 'u32[72,128]{1,0:T(1,128)}', space=vmem, size = 0x9000, scoped, tag = 'internal scratch']
  %s0 = inlined_call_operand.vmem [shape: f32[8,16], index: 0, kind: input, shape index: {}]
  %s1 = inlined_call_operand.hbm [shape: f32[16,384], index: 1, kind: input, shape index: {}]
  %s2 = inlined_call_operand.vmem [shape: f32[1,384], index: 2, kind: input, shape index: {}]
  %s3 = inlined_call_operand.hbm [shape: f32[128,128], index: 3, kind: input, shape index: {}]
  %s4 = inlined_call_operand.vmem [shape: f32[1,128], index: 4, kind: input, shape index: {}]
  %s5 = inlined_call_operand.vmem [shape: f32[8,128], index: 5, kind: output, shape index: {}]
  %s6 = sld [smem:[#allocation0]]
  $region38: #{_forward_prepared.1} parent=0
    _
  %s8 = ssub.s32 1, %s6
  %s9 = scalar_select 0, %s8, %s6
  $region1: #{_forward_prepared.1} parent=0
    #allocation2 [shape = 'u8[24576]{0}', space=vmem, size = 0x6000, scoped, tag = 'input window, operand 1, single buffered']
    #allocation3 [shape = 's32[1]{0}', space=sflag, size = 0x4, scoped, tag = 'scoped memory for _forward_prepared.1']
    #allocation4 [shape = 'u8[65536]{0}', space=vmem, size = 0x10000, scoped, tag = 'input window, operand 3, single buffered']
    #allocation5 [shape = 's32[1]{0}', space=sflag, size = 0x4, scoped, tag = 'scoped memory for _forward_prepared.1']
    %10 = vsyncpa [#allocation3], 0
    %11 = vsyncpa [#allocation5], 0
    // Predicated region
    $region2: #{_forward_prepared.1} parent=1 // pred_check
      _
    $region3: #{_forward_prepared.1} parent=1 // pred_check_branch
      %13 = sbr.rel (0) target = $region5
    $region4: #{_forward_prepared.1} parent=1 // pred_region
      _
    $region5: #{_forward_prepared.1} parent=1 // pred_fallthru
      _
    // Predicated region
    $region6: #{_forward_prepared.1} parent=1 // pred_check
      _
    $region7: #{_forward_prepared.1} parent=1 // pred_check_branch
      %15 = sbr.rel (0) target = $region9
    $region8: #{_forward_prepared.1} parent=1 // pred_region
      %17 = vsyncadd [#allocation3], 0
      %s18 = sshll.u32 %s1, 4
      %s19 = int_to_ptr.hbm [resolvable:$true] %s18
      %s20 = sshll.u32 [#allocation2], 4
      %s21 = int_to_ptr.vmem [resolvable:$true] %s20
      %26 = dma.hbm_to_vmem [thread:$0]  %s19, 768, %s21, [#allocation3], 384, 384, 24
    $region9: #{_forward_prepared.1} parent=1 // pred_fallthru
      _
    // Predicated region
    $region10: #{_forward_prepared.1} parent=1 // pred_check
      _
    $region11: #{_forward_prepared.1} parent=1 // pred_check_branch
      %28 = sbr.rel (0) target = $region13
    $region12: #{_forward_prepared.1} parent=1 // pred_region
      _
    $region13: #{_forward_prepared.1} parent=1 // pred_fallthru
      _
    // Predicated region
    $region14: #{_forward_prepared.1} parent=1 // pred_check
      _
    $region15: #{_forward_prepared.1} parent=1 // pred_check_branch
      %30 = sbr.rel (0) target = $region17
    $region16: #{_forward_prepared.1} parent=1 // pred_region
      %32 = vsyncadd [#allocation5], 0
      %s33 = sshll.u32 %s3, 4
      %s34 = int_to_ptr.hbm [resolvable:$true] %s33
      %s35 = sshll.u32 [#allocation4], 4
      %s36 = int_to_ptr.vmem [resolvable:$true] %s35
      %41 = dma.hbm_to_vmem [thread:$0]  %s34, 2048, %s36, [#allocation5], 128, 128, 8
    $region17: #{_forward_prepared.1} parent=1 // pred_fallthru
      _
    // Predicated region
    $region18: #{_forward_prepared.1} parent=1 // pred_check
      _
    $region19: #{_forward_prepared.1} parent=1 // pred_check_branch
      %43 = sbr.rel (0) target = $region21
    $region20: #{_forward_prepared.1} parent=1 // pred_region
      _
    $region21: #{_forward_prepared.1} parent=1 // pred_fallthru
      _
    // Predicated region
    $region22: #{_forward_prepared.1} parent=1 // pred_check
      _
    $region23: #{_forward_prepared.1} parent=1 // pred_check_branch
      %45 = sbr.rel (0) target = $region25
    $region24: #{_forward_prepared.1} parent=1 // pred_region
      %47 = dma.done [#allocation3], 768
    $region25: #{_forward_prepared.1} parent=1 // pred_fallthru
      _
    // Predicated region
    $region26: #{_forward_prepared.1} parent=1 // pred_check
      _
    $region27: #{_forward_prepared.1} parent=1 // pred_check_branch
      %49 = sbr.rel (0) target = $region29
    $region28: #{_forward_prepared.1} parent=1 // pred_region
      %51 = dma.done [#allocation5], 2048
    $region29: #{_forward_prepared.1} parent=1 // pred_fallthru
      _
    %v52 = vld [vmem:[%s0] sm:$0xff]
    %v53 = vld [vmem:[#allocation2] sm:$0xff]
    %v54 = vld [vmem:[#allocation2 + $0x8] sm:$0xff]
    %v55 = vld [vmem:[#allocation2 + $0x10] sm:$0xff]
    %v56 = vld [vmem:[#allocation2 + $0x18] sm:$0xff]
    %v57 = vld [vmem:[#allocation2 + $0x20] sm:$0xff]
    %v58 = vld [vmem:[#allocation2 + $0x28] sm:$0xff]
    %v59 = vld [vmem:[%s2] sm:$0x7]
    %v61 = vperm.slane %v59, 0
    %v62 = vperm.slane %v59, 1
    %v63 = vperm.slane %v59, 2
    %vm67 = vcmask 130048
    %v69 = vsel %vm67, %v52, 0
    %71 = vmatpush.msra.mxu0 0.0
    %72 = vmatpush.msra.mxu0 0.0
    %73 = vmatpush.msra.mxu0 0.0
    %74 = vmatpush.msra.mxu0 0.0
    %75 = vmatpush.msra.mxu0 0.0
    %76 = vmatpush.msra.mxu0 0.0
    %77 = vmatpush.msra.mxu0 0.0
    %78 = vmatpush.msra.mxu0 0.0
    %79 = vmatpush.msra.mxu0 0.0
    %80 = vmatpush.msra.mxu0 0.0
    %81 = vmatpush.msra.mxu0 0.0
    %82 = vmatpush.msra.mxu0 0.0
    %83 = vmatpush.msra.mxu0 0.0
    %84 = vmatpush.msra.mxu0 0.0
    %85 = vmatpush.msra.mxu0 %v56
    %86 = vmatpush.msra.mxu0 %v53
    %87 = vmatmul.f32.gmra.mxu0 %v69
    %v88 = vpop.f32.mrf.mxu0
    %v89 = vadd.f32 %v61, %v88
    %90 = vdwg.mxu0
    %91 = vmatpush.msra.mxu0 0.0
    %92 = vmatpush.msra.mxu0 0.0
    %93 = vmatpush.msra.mxu0 0.0
    %94 = vmatpush.msra.mxu0 0.0
    %95 = vmatpush.msra.mxu0 0.0
    %96 = vmatpush.msra.mxu0 0.0
    %97 = vmatpush.msra.mxu0 0.0
    %98 = vmatpush.msra.mxu0 0.0
    %99 = vmatpush.msra.mxu0 0.0
    %100 = vmatpush.msra.mxu0 0.0
    %101 = vmatpush.msra.mxu0 0.0
    %102 = vmatpush.msra.mxu0 0.0
    %103 = vmatpush.msra.mxu0 0.0
    %104 = vmatpush.msra.mxu0 0.0
    %105 = vmatpush.msra.mxu0 %v57
    %106 = vmatpush.msra.mxu0 %v54
    %107 = vmatmul.f32.gmra.mxu0 %v69
    %v108 = vpop.f32.mrf.mxu0
    %v109 = vadd.f32 %v62, %v108
    %110 = vdwg.mxu0
    %111 = vmatpush.msra.mxu0 0.0
    %112 = vmatpush.msra.mxu0 0.0
    %113 = vmatpush.msra.mxu0 0.0
    %114 = vmatpush.msra.mxu0 0.0
    %115 = vmatpush.msra.mxu0 0.0
    %116 = vmatpush.msra.mxu0 0.0
    %117 = vmatpush.msra.mxu0 0.0
    %118 = vmatpush.msra.mxu0 0.0
    %119 = vmatpush.msra.mxu0 0.0
    %120 = vmatpush.msra.mxu0 0.0
    %121 = vmatpush.msra.mxu0 0.0
    %122 = vmatpush.msra.mxu0 0.0
    %123 = vmatpush.msra.mxu0 0.0
    %124 = vmatpush.msra.mxu0 0.0
    %125 = vmatpush.msra.mxu0 %v58
    %126 = vmatpush.msra.mxu0 %v55
    %127 = vmatmul.f32.gmra.mxu0 %v69
    %v128 = vpop.f32.mrf.mxu0
    %v129 = vadd.f32 %v63, %v128
    %130 = vdwg.mxu0
    %v131 = vxor.u32 %v89, 2147483648
    %v132 = vmul.f32 %v131, 1.442695
    %v133 = vpow.pop %v132
    %v134 = vadd.f32 %v133, 1.0
    %v135 = vrcp.pop %v134
    %v136 = vmul.f32 %v134, %v135
    %v137 = vsub.f32 1.0, %v136
    %v138 = vmul.f32 %v135, %v137
    %v139 = vadd.f32 %v135, %v138
    %vm140 = vweird.f32 %v134
    %vm141 = vweird.f32 %v135
    %vm142 = vmor %vm140, %vm141
    %v143 = vsel %vm142, %v135, %v139
    %v144 = vand.u32 2147483647, %v134
    %vm145 = vcmp.eq.f32.partialorder %v144, 8.507059e+37
    %v146 = vand.u32 %v134, 2147483648
    %v147 = vor.u32 1.1754944e-38, %v146
    %v148 = vsel %vm145, %v147, %v143
    %v149 = vmul.f32 1.0, %v148
    %v150 = vtanh.pop %v109
    %v151 = vxor.u32 %v129, 2147483648
    %v152 = vmul.f32 %v151, 1.442695
    %v153 = vpow.pop %v152
    %v154 = vadd.f32 %v153, 1.0
    %v155 = vrcp.pop %v154
    %v156 = vmul.f32 %v154, %v155
    %v157 = vsub.f32 1.0, %v156
    %v158 = vmul.f32 %v155, %v157
    %v159 = vadd.f32 %v155, %v158
    %vm160 = vweird.f32 %v154
    %vm161 = vweird.f32 %v155
    %vm162 = vmor %vm160, %vm161
    %v163 = vsel %vm162, %v155, %v159
    %v164 = vand.u32 2147483647, %v154
    %vm165 = vcmp.eq.f32.partialorder %v164, 8.507059e+37
    %v166 = vand.u32 %v154, 2147483648
    %v167 = vor.u32 1.1754944e-38, %v166
    %v168 = vsel %vm165, %v167, %v163
    %v169 = vmul.f32 1.0, %v168
    %v170 = vmul.f32 %v149, %v150
    %v171 = vtanh.pop %v170
    %v172 = vmul.f32 %v169, %v171
    %v173 = vld [vmem:[#allocation4] sm:$0xff]
    %v174 = vld [vmem:[#allocation4 + $0x8] sm:$0xff]
    %v175 = vld [vmem:[#allocation4 + $0x10] sm:$0xff]
    %v176 = vld [vmem:[#allocation4 + $0x18] sm:$0xff]
    %v177 = vld [vmem:[#allocation4 + $0x20] sm:$0xff]
    %v178 = vld [vmem:[#allocation4 + $0x28] sm:$0xff]
    %v179 = vld [vmem:[#allocation4 + $0x30] sm:$0xff]
    %v180 = vld [vmem:[#allocation4 + $0x38] sm:$0xff]
    %v181 = vld [vmem:[#allocation4 + $0x40] sm:$0xff]
    %v182 = vld [vmem:[#allocation4 + $0x48] sm:$0xff]
    %v183 = vld [vmem:[#allocation4 + $0x50] sm:$0xff]
    %v184 = vld [vmem:[#allocation4 + $0x58] sm:$0xff]
    %v185 = vld [vmem:[#allocation4 + $0x60] sm:$0xff]
    %v186 = vld [vmem:[#allocation4 + $0x68] sm:$0xff]
    %v187 = vld [vmem:[#allocation4 + $0x70] sm:$0xff]
    %v188 = vld [vmem:[#allocation4 + $0x78] sm:$0xff]
    %v189 = vld [vmem:[%s4] sm:$0x1]
    %v191 = vperm.slane %v189, 0
    %193 = vmatpush.msra.mxu0 %v188
    %194 = vmatpush.msra.mxu0 %v187
    %195 = vmatpush.msra.mxu0 %v186
    %196 = vmatpush.msra.mxu0 %v185
    %197 = vmatpush.msra.mxu0 %v184
    %198 = vmatpush.msra.mxu0 %v183
    %199 = vmatpush.msra.mxu0 %v182
    %200 = vmatpush.msra.mxu0 %v181
    %201 = vmatpush.msra.mxu0 %v180
    %202 = vmatpush.msra.mxu0 %v179
    %203 = vmatpush.msra.mxu0 %v178
    %204 = vmatpush.msra.mxu0 %v177
    %205 = vmatpush.msra.mxu0 %v176
    %206 = vmatpush.msra.mxu0 %v175
    %207 = vmatpush.msra.mxu0 %v174
    %208 = vmatpush.msra.mxu0 %v173
    %209 = vmatmul.f32.gmra.mxu0 %v172
    %v210 = vpop.f32.mrf.mxu0
    %v211 = vadd.f32 %v191, %v210
    %212 = vdwg.mxu0
    %213 = vst [vmem:[%s5] sm:$0xff] %v211
    // Predicated region
    $region30: #{_forward_prepared.1} parent=1 // pred_check
      _
    $region31: #{_forward_prepared.1} parent=1 // pred_check_branch
      %215 = sbr.rel (0) target = $region33
    $region32: #{_forward_prepared.1} parent=1 // pred_region
      _
    $region33: #{_forward_prepared.1} parent=1 // pred_fallthru
      _
    // Predicated region
    $region34: #{_forward_prepared.1} parent=1 // pred_check
      _
    $region35: #{_forward_prepared.1} parent=1 // pred_check_branch
      %217 = sbr.rel (0) target = $region37
    $region36: #{_forward_prepared.1} parent=1 // pred_region
      _
    $region37: #{_forward_prepared.1} parent=1 // pred_fallthru
      _
    %218 = vsyncpa [#allocation3], 1
    %219 = vsyncpa [#allocation5], 1

</llo_original>
